<compile_context>
chip_gen: v7x
topology: tpu7x:2x2x1
jax: 0.10.0
libtpu: 0.0.40
codegen_flags: <defaults>
</compile_context>

<pallas_src>
import math

import jax
import jax.numpy as jnp
from jax.experimental import pallas as pl
from jax.experimental.pallas import tpu as pltpu


def make_positional_encoding_table(dim: int, max_len: int = 100) -> jnp.ndarray:
    """Deterministic buffer init, identical to the PyTorch __init__."""
    position = jnp.arange(0, max_len, dtype=jnp.float32)[:, None]            # (max_len, 1)
    div_term = jnp.exp(
        jnp.arange(0, dim, 2, dtype=jnp.float32) * -(math.log(10000.0) / dim)
    )                                                                         # (dim//2,)
    angles = position * div_term                                              # (max_len, dim//2)
    # interleave: pe[:, 0::2] = sin, pe[:, 1::2] = cos
    pe = jnp.stack([jnp.sin(angles), jnp.cos(angles)], axis=-1).reshape(max_len, dim)
    return pe.astype(jnp.float32)


def _add_pe_kernel(x_ref, pe_ref, o_ref):
    # x_ref / o_ref: (bt, lt) lane-dense; pe_ref: (1, lt) -> sublane broadcast.
    o_ref[...] = x_ref[...] + pe_ref[...]


def _sublane_quantum(itemsize: int) -> int:
    # Sub-32-bit dtypes pack along sublanes: bf16 vreg is [16,128], int8/fp8 [32,128].
    return {4: 8, 2: 16, 1: 32}.get(itemsize, 8)


def _target_block_bytes() -> int:
    """Per-generation x-block byte target, kept inside default scoped VMEM
    once double-buffered (2x in + 2x out + pe)."""
    try:
        kind = jax.devices()[0].device_kind.lower()
    except Exception:
        return 1 << 20
    if "v7" in kind:
        return 4 << 20      # 3.2 TB/s HBM: bigger blocks amortize ~0.35us/step
    if "v6" in kind:
        return 2 << 20
    return 1 << 20          # v5e / older / unknown: 16 MiB default scoped VMEM


def _largest_aligned_divisor(n: int, quantum: int, cap: int):
    """Largest multiple of `quantum` that divides `n` and is <= cap (None if none)."""
    best = None
    cap = min(n, max(quantum, cap))
    t = quantum
    while t <= cap:
        if n % t == 0:
            best = t
        t += quantum
    return best


def positional_encoding_forward(
    x: jnp.ndarray,
    pe: jnp.ndarray,
    *,
    force_pallas: bool = False,
    target_block_bytes: int | None = None,
) -> jnp.ndarray:
    """x: (B, S, D); pe: (max_len, D).  Returns x + pe[:S] broadcast over B."""
    B, S, D = x.shape
    max_len = pe.shape[0]
    if S > max_len:
        raise ValueError(f"sequence length {S} exceeds positional-encoding max_len {max_len}")

    dtype = x.dtype
    itemsize = jnp.dtype(dtype).itemsize
    L = S * D
    target = target_block_bytes if target_block_bytes is not None else _target_block_bytes()

    # Lane-dense flat layout: x -> (B, S*D) slab, pe -> a single (1, S*D) row.
    # TODO(synk): for per-layer/per-step reuse, hoist pe_row (slice+cast+reshape) out of the call.
    x2 = x.reshape(B, L)
    pe_row = pe[:S, :].astype(dtype).reshape(1, L)

    total_bytes = B * L * itemsize
    if not force_pallas and total_bytes <= target:
        # Grid would collapse to ~1 step (no pipelining); XLA's fused add is at roofline.
        return (x2 + pe_row).reshape(B, S, D)

    q = _sublane_quantum(itemsize)
    row_bytes = L * itemsize

    if L % 128 == 0 and q * row_bytes > target:
        # --- Lane-tiled path (rows too big for one block). ---
        # Batch is the INNER grid axis: pe's block index only changes with the lane
        # index, so its DMA is skipped across consecutive batch steps.
        lt_cap = max(128, target // (q * itemsize))
        lt = _largest_aligned_divisor(L, 128, lt_cap) or 128
        if B % q == 0:
            bt = _largest_aligned_divisor(B, q, max(q, target // (lt * itemsize))) or q
        else:
            bt = B                                   # full dim -> (8,128) rule satisfied
        grid = (L // lt, B // bt)
        in_specs = [
            pl.BlockSpec((bt, lt), lambda l, b: (b, l)),   # x tile
            pl.BlockSpec((1, lt), lambda l, b: (0, l)),    # pe tile (constant over inner axis)
        ]
        out_spec = pl.BlockSpec((bt, lt), lambda l, b: (b, l))
        dims = ("parallel", "parallel")
    else:
        # --- Full-row path: lane block = full L (legal even when L % 128 != 0);
        #     pe has a constant block index -> fetched exactly once. ---
        lt = L
        if B % q == 0:
            bt = _largest_aligned_divisor(B, q, max(q, target // max(1, row_bytes))) or q
        else:
            bt = B
        grid = (B // bt,)
        in_specs = [
            pl.BlockSpec((bt, lt), lambda b: (b, 0)),
            pl.BlockSpec((1, lt), lambda b: (0, 0)),       # resident pe
        ]
        out_spec = pl.BlockSpec((bt, lt), lambda b: (b, 0))
        dims = ("parallel",)

    # Double-buffered working set: 2x in + 2x out + (2x) pe; raise the scoped-VMEM
    # limit only if an edge-case shape forces blocks past the 16 MiB default.
    block_bytes = bt * lt * itemsize
    vmem_need = 4 * block_bytes + 2 * lt * itemsize + (1 << 20)
    compiler_kwargs = dict(dimension_semantics=dims)
    if vmem_need > (16 << 20):
        compiler_kwargs["vmem_limit_bytes"] = int(min(vmem_need, 64 << 20))

    out2 = pl.pallas_call(
        _add_pe_kernel,
        out_shape=jax.ShapeDtypeStruct((B, L), dtype),
        grid_spec=pltpu.PrefetchScalarGridSpec(
            num_scalar_prefetch=0,
            grid=grid,
            in_specs=in_specs,
            out_specs=out_spec,
        ),
        compiler_params=pltpu.CompilerParams(**compiler_kwargs),
    )(x2, pe_row)
    return out2.reshape(B, S, D)


if __name__ == "__main__":
    max_len = 100
    pe = make_positional_encoding_table(32, max_len=max_len)

    # Case 1: module-typical tiny shapes (B=2, S=8, D=32).
    B, S, D = 2, 8, 32
    x = jax.random.normal(jax.random.PRNGKey(0), (B, S, D), dtype=jnp.float32)
    ref = x + pe[None, :S, :]
    out_dispatch = jax.block_until_ready(positional_encoding_forward(x, pe))          # XLA short-circuit
    out_pallas = jax.block_until_ready(positional_encoding_forward(x, pe, force_pallas=True))
    assert out_pallas.shape == (B, S, D)
    assert jnp.allclose(out_dispatch, ref, atol=1e-6), "dispatch-path mismatch"
    assert jnp.allclose(out_pallas, ref, atol=1e-6), "pallas full-row path mismatch"

    # Case 2: S*D = 160 (not a multiple of 128) -> full-row lane-dense path.
    x2 = jax.random.normal(jax.random.PRNGKey(0), (3, 5, 32), dtype=jnp.float32)
    out2 = jax.block_until_ready(positional_encoding_forward(x2, pe, force_pallas=True))
    assert jnp.allclose(out2, x2 + pe[None, :5, :], atol=1e-6), "non-128-multiple path mismatch"

    # Case 3: multi-step batch grid with resident pe (constant block index).
    x3 = jax.random.normal(jax.random.PRNGKey(1), (32, 8, 32), dtype=jnp.float32)
    out3 = jax.block_until_ready(
        positional_encoding_forward(x3, pe, force_pallas=True, target_block_bytes=16 * 1024))
    assert jnp.allclose(out3, x3 + pe[None, :8, :], atol=1e-6), "batch-grid path mismatch"

    # Case 4: lane-tiled path, batch innermost (pe DMA skipped across batch steps).
    x4 = jax.random.normal(jax.random.PRNGKey(2), (16, 8, 32), dtype=jnp.float32)
    out4 = jax.block_until_ready(
        positional_encoding_forward(x4, pe, force_pallas=True, target_block_bytes=4 * 1024))
    assert jnp.allclose(out4, x4 + pe[None, :8, :], atol=1e-6), "lane-tiled path mismatch"

    # Case 5: bfloat16 (sublane quantum 16; pe cast down to x.dtype).
    x5 = jax.random.normal(jax.random.PRNGKey(3), (16, 8, 32), dtype=jnp.bfloat16)
    out5 = jax.block_until_ready(positional_encoding_forward(x5, pe, force_pallas=True))
    ref5 = x5 + pe[None, :8, :].astype(jnp.bfloat16)
    assert jnp.allclose(out5.astype(jnp.float32), ref5.astype(jnp.float32), atol=2e-2), "bf16 mismatch"

    print("KERNEL_OK")
</pallas_src>

<mosaic_0001>
module attributes {stable_mosaic.version = 11 : i64} {
  func.func @_add_pe_kernel(%arg0: i32, %arg1: memref<2x256xf32, #tpu.memory_space<vmem>>, %arg2: memref<1x256xf32, #tpu.memory_space<vmem>>, %arg3: memref<2x256xf32, #tpu.memory_space<vmem>>) attributes {dimension_semantics = [#tpu.dimension_semantics<parallel>], iteration_bounds = array<i64: 1>, scalar_prefetch = 0 : i64, scratch_operands = 0 : i64, tpu.core_type = #tpu.core_type<tc>, window_params = [{transform_indices = @transform_0, window_bounds = array<i64: 2, 256>}, {pipeline_mode = #tpu.pipeline_mode<synchronous>, transform_indices = @transform_1, window_bounds = array<i64: 1, 256>}, {transform_indices = @transform_2, window_bounds = array<i64: 2, 256>}]} {
    %c0 = arith.constant 0 : index
    %c0_0 = arith.constant 0 : index
    %0 = vector.load %arg1[%c0, %c0_0] : memref<2x256xf32, #tpu.memory_space<vmem>>, vector<2x256xf32>
    %c0_1 = arith.constant 0 : index
    %c0_2 = arith.constant 0 : index
    %1 = vector.load %arg2[%c0_1, %c0_2] : memref<1x256xf32, #tpu.memory_space<vmem>>, vector<1x256xf32>
    %2 = vector.broadcast %1 : vector<1x256xf32> to vector<2x256xf32>
    %3 = arith.addf %0, %2 : vector<2x256xf32>
    %c0_3 = arith.constant 0 : index
    %c0_4 = arith.constant 0 : index
    %4 = vector.load %arg3[%c0_3, %c0_4] : memref<2x256xf32, #tpu.memory_space<vmem>>, vector<2x256xf32>
    tpu.vector_store %arg3[%c0_3, %c0_4], %3 {strides = array<i32>} : memref<2x256xf32, #tpu.memory_space<vmem>>, vector<2x256xf32>,
    return
  }
  func.func @transform_0(%arg0: i32) -> (i32, i32) {
    %c0_i32 = arith.constant 0 : i32
    %c0_i32_0 = arith.constant 0 : i32
    return %arg0, %c0_i32 : i32, i32
  }
  func.func @transform_1(%arg0: i32) -> (i32, i32) {
    %c0_i32 = arith.constant 0 : i32
    %c0_i32_0 = arith.constant 0 : i32
    %c0_i32_1 = arith.constant 0 : i32
    return %c0_i32, %c0_i32_0 : i32, i32
  }
  func.func @transform_2(%arg0: i32) -> (i32, i32) {
    %c0_i32 = arith.constant 0 : i32
    %c0_i32_0 = arith.constant 0 : i32
    return %arg0, %c0_i32 : i32, i32
  }
}

</mosaic_0001>

<llo_original>
// kernel: tpu_custom_call.1
$region0: #{tpu_custom_call.1}
  #allocation0 [shape = 'u32[]', space=smem, size = 0x4, offset = 0x4, fixed_abs, tag = 'smem constant byte address 0x4 - core index']
  #allocation1 [shape = 'u32[144,128]{1,0:T(1,128)}', space=vmem, size = 0x12000, scoped, tag = 'internal scratch']
  %s0 = inlined_call_operand.hbm [shape: f32[2,256], index: 0, kind: input, shape index: {}]
  %s1 = inlined_call_operand.vmem [shape: f32[1,256], index: 1, kind: input, shape index: {}]
  %s2 = inlined_call_operand.hbm [shape: f32[2,256], index: 2, kind: output, shape index: {}]
  %s3 = sld [smem:[#allocation0]]
  $region22: #{tpu_custom_call.1} parent=0
    _
  %s5 = ssub.s32 1, %s3
  %s6 = scalar_select 0, %s5, %s3
  $region1: #{tpu_custom_call.1} parent=0
    #allocation2 [shape = 'u8[2048]{0}', space=vmem, size = 0x800, scoped, tag = 'input window, operand 0, single buffered']
    #allocation3 [shape = 's32[1]{0}', space=sflag, size = 0x4, scoped, tag = 'scoped memory for tpu_custom_call.1']
    #allocation4 [shape = 's32[1]{0}', space=sflag, size = 0x4, scoped, tag = 'scoped memory for tpu_custom_call.1']
    #allocation5 [shape = 'u8[2048]{0}', space=vmem, size = 0x800, scoped, tag = 'output window, operand 0, single buffered']
    %7 = vsyncpa [#allocation3], 0
    %8 = vsyncpa [#allocation4], 0
    // Predicated region
    $region2: #{tpu_custom_call.1} parent=1 // pred_check
      _
    $region3: #{tpu_custom_call.1} parent=1 // pred_check_branch
      %10 = sbr.rel (0) target = $region5
    $region4: #{tpu_custom_call.1} parent=1 // pred_region
      %s12 = ssub.s32 64, 64
      %13 = vsyncadd [#allocation3], %s12
      %s15 = sshll.u32 [#allocation2], 4
      %s16 = int_to_ptr.vmem [resolvable:$true] %s15
      %18 = dma.hbm_to_vmem [thread:$0]  %s0, 64, %s16, [#allocation3]
    $region5: #{tpu_custom_call.1} parent=1 // pred_fallthru
      _
    // Predicated region
    $region6: #{tpu_custom_call.1} parent=1 // pred_check
      _
    $region7: #{tpu_custom_call.1} parent=1 // pred_check_branch
      %20 = sbr.rel (0) target = $region9
    $region8: #{tpu_custom_call.1} parent=1 // pred_region
      _
    $region9: #{tpu_custom_call.1} parent=1 // pred_fallthru
      _
    // Predicated region
    $region10: #{tpu_custom_call.1} parent=1 // pred_check
      _
    $region11: #{tpu_custom_call.1} parent=1 // pred_check_branch
      %22 = sbr.rel (0) target = $region13
    $region12: #{tpu_custom_call.1} parent=1 // pred_region
      %23 = dma.done [#allocation3], 64
    $region13: #{tpu_custom_call.1} parent=1 // pred_fallthru
      _
    %v24 = vld [vmem:[#allocation2] sm:$0xf]
    %v25 = vld [vmem:[%s1] sm:$0x3]
    %v27 = vlaneseq
    %v28 = vshrl.u32 %v27, 7
    %v29 = vsub.s32 0, %v28
    %v30 = vrot.slane %v25, %v29
    %v31 = vlaneseq
    %v32 = vshrl.u32 %v31, 7
    %v33 = vsub.s32 1, %v32
    %v34 = vrot.slane %v25, %v33
    %v35 = vcombine.low %v30, %v34
    %v37 = vunpack.c.l.s4 1983009808
    %v38 = vunpack.c.0.s8 %v37
    %v39 = vlaneseq
    %v40 = vshrl.u32 %v39, 7
    %v41 = vsub.s32 %v38, %v40
    %v42 = vrot.slane %v35, %v41
    %v44 = vadd.f32 %v24, %v42
    %45 = vst [vmem:[#allocation5] sm:$0xf] %v44
    // Predicated region
    $region14: #{tpu_custom_call.1} parent=1 // pred_check
      _
    $region15: #{tpu_custom_call.1} parent=1 // pred_check_branch
      %47 = sbr.rel (0) target = $region17
    $region16: #{tpu_custom_call.1} parent=1 // pred_region
      %s49 = ssub.s32 64, 64
      %50 = vsyncadd [#allocation4], %s49
      %s52 = sshll.u32 [#allocation5], 4
      %s53 = int_to_ptr.vmem [resolvable:$true] %s52
      %55 = dma.vmem_to_hbm [thread:$0]  %s53, 64, %s2, [#allocation4]
    $region17: #{tpu_custom_call.1} parent=1 // pred_fallthru
      _
    // Predicated region
    $region18: #{tpu_custom_call.1} parent=1 // pred_check
      _
    $region19: #{tpu_custom_call.1} parent=1 // pred_check_branch
      %57 = sbr.rel (0) target = $region21
    $region20: #{tpu_custom_call.1} parent=1 // pred_region
      %58 = dma.done [#allocation4], 64
    $region21: #{tpu_custom_call.1} parent=1 // pred_fallthru
      _
    %59 = vsyncpa [#allocation3], 1
    %60 = vsyncpa [#allocation4], 1

</llo_original>
